<compile_context>
chip_gen: v5e
topology: v5e:2x2
jax: 0.10.0
libtpu: 0.0.40
codegen_flags: <defaults>
</compile_context>

<pallas_src>
import functools

import jax
import jax.numpy as jnp
from jax.experimental import pallas as pl
from jax.experimental.pallas import tpu as pltpu

_LANES = 128


def _round_up(x, m):
    return ((x + m - 1) // m) * m


def _stress_kernel(diff_ref, d_ref, out_ref, acc_ref, *, num_edges):
    """One (bs, 128) lane-dense block of edges; accumulates sum of edge_stress."""
    c = pl.program_id(0)              # edge-range split (parallel / megacore)
    i = pl.program_id(1)              # block within the split (arbitrary)
    n_inner = pl.num_programs(1)

    @pl.when(i == 0)
    def _():
        acc_ref[...] = jnp.zeros_like(acc_ref)

    diff = diff_ref[...]                              # [D, bs, 128]
    sq = jnp.sum(diff * diff, axis=0)                 # [bs, 128] (VPU adds over D)
    eu = jnp.sqrt(sq)                                 # [bs, 128]
    d = d_ref[...]                                    # [bs, 128]
    inv_d = pl.reciprocal(d, approx=False)
    r = (eu - d) * inv_d                              # |.| dropped: squared anyway
    stress = r * r                                    # [bs, 128]

    # Mask padded tail edges (compile-time num_edges).
    bs, lanes = d_ref.shape
    block = c * n_inner + i
    base = block * (bs * lanes)
    row = jax.lax.broadcasted_iota(jnp.int32, (bs, lanes), 0)
    lane = jax.lax.broadcasted_iota(jnp.int32, (bs, lanes), 1)
    valid = (base + row * lanes + lane) < num_edges

    acc_ref[...] += jnp.where(valid, stress, 0.0)

    @pl.when(i == n_inner - 1)
    def _():
        partial = jnp.sum(acc_ref[...])               # one XLU reduce per split
        out_ref[...] = jnp.zeros(out_ref.shape, out_ref.dtype) + partial


def stress(node_pos, full_edge_index, full_edge_attr, batch_vec, edge_index,
           num_graphs, *, block_rows=512, num_splits=2):
    """Forward pass of Stress(reduce=mean). Returns a scalar.

    batch_vec / edge_index are accepted for API parity with the PyTorch module
    but are not needed: mean(scatter_sum(x, idx)) == sum(x) / num_graphs.
    """
    del batch_vec, edge_index  # exact identity for reduce == mean

    # Glue: data-dependent gathers + subtract stay in plain JAX (XLA fuses the
    # subtract into the gather); only lane-dense slabs are streamed into the
    # kernel.
    pos_t = node_pos.astype(jnp.float32).T                      # [D, N]
    diff_t = (jnp.take(pos_t, full_edge_index[0], axis=1)
              - jnp.take(pos_t, full_edge_index[1], axis=1))    # [D, E]
    d = full_edge_attr[:, 0].astype(jnp.float32)                # [E]

    D, E = diff_t.shape
    rows_raw = (E + _LANES - 1) // _LANES
    bs = min(block_rows, _round_up(rows_raw, 8))                # sublane tile
    rows = _round_up(rows_raw, bs * num_splits)
    e_pad = rows * _LANES
    inner = (rows // bs) // num_splits                          # blocks per split

    diff_slab = jnp.pad(diff_t, ((0, 0), (0, e_pad - E))).reshape(D, rows, _LANES)
    d_slab = jnp.pad(d, (0, e_pad - E),
                     constant_values=1.0).reshape(rows, _LANES)

    kernel = functools.partial(_stress_kernel, num_edges=E)
    out = pl.pallas_call(
        kernel,
        out_shape=jax.ShapeDtypeStruct((num_splits, 8, _LANES), jnp.float32),
        grid=(num_splits, inner),
        in_specs=[
            pl.BlockSpec((D, bs, _LANES), lambda c, i: (0, c * inner + i, 0)),
            pl.BlockSpec((bs, _LANES), lambda c, i: (c * inner + i, 0)),
        ],
        out_specs=pl.BlockSpec((1, 8, _LANES), lambda c, i: (c, 0, 0)),
        scratch_shapes=[pltpu.VMEM((bs, _LANES), jnp.float32)],
        compiler_params=pltpu.CompilerParams(
            dimension_semantics=("parallel", "arbitrary")),
    )(diff_slab, d_slab)

    # Combine per-split partial sums; mean over graphs == total / num_graphs.
    return jnp.sum(out[:, 0, 0]) / num_graphs


def stress_ref(node_pos, full_edge_index, full_edge_attr, batch_vec, edge_index,
               num_graphs):
    """Pure-JAX reference of the PyTorch forward."""
    start = node_pos[full_edge_index[0]]
    end = node_pos[full_edge_index[1]]
    eu = jnp.linalg.norm(start - end, axis=1)
    d = full_edge_attr[:, 0]
    edge_stress = jnp.square(jnp.abs(eu - d) / d)
    index = batch_vec[edge_index[0]]
    graph_stress = jax.ops.segment_sum(edge_stress, index,
                                       num_segments=num_graphs)
    return jnp.mean(graph_stress)


if __name__ == "__main__":
    key = jax.random.PRNGKey(0)
    num_graphs = 3
    nodes_per_graph = 4
    D = 2
    N = num_graphs * nodes_per_graph

    k1, k2 = jax.random.split(key)
    node_pos = jax.random.normal(k1, (N, D), dtype=jnp.float32)

    # Complete (directed, no self-loop) graphs, as DeepGD uses.
    src, dst, batch_list = [], [], []
    for g in range(num_graphs):
        off = g * nodes_per_graph
        for i in range(nodes_per_graph):
            batch_list.append(g)
            for j in range(nodes_per_graph):
                if i != j:
                    src.append(off + i)
                    dst.append(off + j)
    full_edge_index = jnp.array([src, dst], dtype=jnp.int32)   # [2, E]
    edge_index = full_edge_index                               # complete graphs
    batch_vec = jnp.array(batch_list, dtype=jnp.int32)         # [N]
    E = full_edge_index.shape[1]

    # full_edge_attr[:, 0] = target graph-theoretic distance d > 0
    d_vals = jax.random.uniform(k2, (E,), minval=0.5, maxval=2.0,
                                dtype=jnp.float32)
    full_edge_attr = jnp.stack([d_vals, jnp.ones_like(d_vals)], axis=1)  # [E, 2]

    out = stress(node_pos, full_edge_index, full_edge_attr, batch_vec,
                 edge_index, num_graphs)
    out = jax.block_until_ready(out)

    ref = stress_ref(node_pos, full_edge_index, full_edge_attr, batch_vec,
                     edge_index, num_graphs)
    assert jnp.allclose(out, ref, rtol=1e-5, atol=1e-5), (out, ref)
    print("KERNEL_OK")
</pallas_src>

<mosaic_0001>
module attributes {stable_mosaic.version = 11 : i64} {
  func.func @_stress_kernel(%arg0: i32, %arg1: i32, %arg2: memref<2x8x128xf32, #tpu.memory_space<vmem>>, %arg3: memref<8x128xf32, #tpu.memory_space<vmem>>, %arg4: memref<1x8x128xf32, #tpu.memory_space<vmem>>, %arg5: memref<8x128xf32, #tpu.memory_space<vmem>>) attributes {dimension_semantics = [#tpu.dimension_semantics<parallel>, #tpu.dimension_semantics<arbitrary>], iteration_bounds = array<i64: 2, 1>, scalar_prefetch = 0 : i64, scratch_operands = 1 : i64, tpu.core_type = #tpu.core_type<tc>, window_params = [{transform_indices = @transform_0, window_bounds = array<i64: 2, 8, 128>}, {transform_indices = @transform_1, window_bounds = array<i64: 8, 128>}, {transform_indices = @transform_2, window_bounds = array<i64: 1, 8, 128>}]} {
    %c0_i32 = arith.constant 0 : i32
    %0 = arith.cmpi eq, %arg1, %c0_i32 : i32
    %1 = arith.extui %0 : i1 to i32
    %c0_i32_0 = arith.constant 0 : i32
    %2 = arith.cmpi ne, %1, %c0_i32_0 : i32
    scf.if %2 {
      %cst_12 = arith.constant 0.000000e+00 : f32
      %32 = vector.broadcast %cst_12 : f32 to vector<8x128xf32>
      %c0_13 = arith.constant 0 : index
      %c0_14 = arith.constant 0 : index
      %33 = vector.load %arg5[%c0_13, %c0_14] : memref<8x128xf32, #tpu.memory_space<vmem>>, vector<8x128xf32>
      tpu.vector_store %arg5[%c0_13, %c0_14], %32 {strides = array<i32>} : memref<8x128xf32, #tpu.memory_space<vmem>>, vector<8x128xf32>,
    } else {
    }
    %c0 = arith.constant 0 : index
    %c0_1 = arith.constant 0 : index
    %c0_2 = arith.constant 0 : index
    %3 = vector.load %arg2[%c0, %c0_1, %c0_2] : memref<2x8x128xf32, #tpu.memory_space<vmem>>, vector<2x8x128xf32>
    %4 = arith.mulf %3, %3 : vector<2x8x128xf32>
    %cst = arith.constant dense<0.000000e+00> : vector<8x128xf32>
    %5 = vector.multi_reduction <add>, %4, %cst [0] : vector<2x8x128xf32> to vector<8x128xf32>
    %6 = math.sqrt %5 : vector<8x128xf32>
    %c0_3 = arith.constant 0 : index
    %c0_4 = arith.constant 0 : index
    %7 = vector.load %arg3[%c0_3, %c0_4] : memref<8x128xf32, #tpu.memory_space<vmem>>, vector<8x128xf32>
    %8 = tpu.reciprocal %7 : vector<8x128xf32> -> vector<8x128xf32>
    %9 = arith.subf %6, %7 : vector<8x128xf32>
    %10 = arith.mulf %9, %8 : vector<8x128xf32>
    %11 = arith.mulf %10, %10 : vector<8x128xf32>
    %c1_i32 = arith.constant 1 : i32
    %12 = arith.muli %arg0, %c1_i32 : i32
    %13 = arith.addi %12, %arg1 : i32
    %c1024_i32 = arith.constant 1024 : i32
    %14 = arith.muli %13, %c1024_i32 : i32
    %15 = tpu.iota {dimensions = array<i32: 0>} : vector<8x128xi32>
    %16 = tpu.iota {dimensions = array<i32: 1>} : vector<8x128xi32>
    %c128_i32 = arith.constant 128 : i32
    %17 = vector.broadcast %c128_i32 : i32 to vector<8x128xi32>
    %18 = arith.muli %15, %17 : vector<8x128xi32>
    %19 = vector.broadcast %14 : i32 to vector<8x128xi32>
    %20 = arith.addi %19, %18 : vector<8x128xi32>
    %21 = arith.addi %20, %16 : vector<8x128xi32>
    %c36_i32 = arith.constant 36 : i32
    %22 = vector.broadcast %c36_i32 : i32 to vector<8x128xi32>
    %23 = arith.cmpi slt, %21, %22 : vector<8x128xi32>
    %c0_5 = arith.constant 0 : index
    %c0_6 = arith.constant 0 : index
    %24 = vector.load %arg5[%c0_5, %c0_6] : memref<8x128xf32, #tpu.memory_space<vmem>>, vector<8x128xf32>
    %cst_7 = arith.constant 0.000000e+00 : f32
    %25 = vector.broadcast %cst_7 : f32 to vector<8x128xf32>
    %26 = arith.select %23, %11, %25 : vector<8x128xi1>, vector<8x128xf32>
    %27 = arith.addf %24, %26 : vector<8x128xf32>
    %c0_8 = arith.constant 0 : index
    %c0_9 = arith.constant 0 : index
    %28 = vector.load %arg5[%c0_8, %c0_9] : memref<8x128xf32, #tpu.memory_space<vmem>>, vector<8x128xf32>
    tpu.vector_store %arg5[%c0_8, %c0_9], %27 {strides = array<i32>} : memref<8x128xf32, #tpu.memory_space<vmem>>, vector<8x128xf32>,
    %c0_i32_10 = arith.constant 0 : i32
    %29 = arith.cmpi eq, %arg1, %c0_i32_10 : i32
    %30 = arith.extui %29 : i1 to i32
    %c0_i32_11 = arith.constant 0 : i32
    %31 = arith.cmpi ne, %30, %c0_i32_11 : i32
    scf.if %31 {
      %c0_12 = arith.constant 0 : index
      %c0_13 = arith.constant 0 : index
      %32 = vector.load %arg5[%c0_12, %c0_13] : memref<8x128xf32, #tpu.memory_space<vmem>>, vector<8x128xf32>
      %33 = vector.shape_cast %32 : vector<8x128xf32> to vector<1x8x128xf32>
      %cst_14 = arith.constant dense<0.000000e+00> : vector<1xf32>
      %34 = vector.multi_reduction <add>, %33, %cst_14 [1, 2] : vector<1x8x128xf32> to vector<1xf32>
      %35 = vector.shape_cast %34 : vector<1xf32> to vector<1x1x1xf32>
      %36 = vector.extract %35[0, 0, 0] : f32 from vector<1x1x1xf32>
      %cst_15 = arith.constant 0.000000e+00 : f32
      %37 = vector.broadcast %cst_15 : f32 to vector<1x8x128xf32>
      %38 = vector.broadcast %36 : f32 to vector<1x8x128xf32>
      %39 = arith.addf %37, %38 : vector<1x8x128xf32>
      %c0_16 = arith.constant 0 : index
      %c0_17 = arith.constant 0 : index
      %c0_18 = arith.constant 0 : index
      %40 = vector.load %arg4[%c0_16, %c0_17, %c0_18] : memref<1x8x128xf32, #tpu.memory_space<vmem>>, vector<1x8x128xf32>
      tpu.vector_store %arg4[%c0_16, %c0_17, %c0_18], %39 {strides = array<i32>} : memref<1x8x128xf32, #tpu.memory_space<vmem>>, vector<1x8x128xf32>,
    } else {
    }
    return
  }
  func.func @transform_0(%arg0: i32, %arg1: i32) -> (i32, i32, i32) {
    %c1_i32 = arith.constant 1 : i32
    %0 = arith.muli %arg0, %c1_i32 : i32
    %1 = arith.addi %0, %arg1 : i32
    %c0_i32 = arith.constant 0 : i32
    %c0_i32_0 = arith.constant 0 : i32
    %c0_i32_1 = arith.constant 0 : i32
    return %c0_i32, %1, %c0_i32_0 : i32, i32, i32
  }
  func.func @transform_1(%arg0: i32, %arg1: i32) -> (i32, i32) {
    %c1_i32 = arith.constant 1 : i32
    %0 = arith.muli %arg0, %c1_i32 : i32
    %1 = arith.addi %0, %arg1 : i32
    %c0_i32 = arith.constant 0 : i32
    %c0_i32_0 = arith.constant 0 : i32
    return %1, %c0_i32 : i32, i32
  }
  func.func @transform_2(%arg0: i32, %arg1: i32) -> (i32, i32, i32) {
    %c0_i32 = arith.constant 0 : i32
    %c0_i32_0 = arith.constant 0 : i32
    %c0_i32_1 = arith.constant 0 : i32
    return %arg0, %c0_i32, %c0_i32_0 : i32, i32, i32
  }
}

</mosaic_0001>

<llo_original>
// kernel: tpu_custom_call.1
$region0: #{tpu_custom_call.1}
  #allocation0 [shape = 'u32[]', space=smem, size = 0x4, offset = 0x4, fixed_abs, tag = 'smem constant byte address 0x4 - core index']
  #allocation1 [shape = 'u32[72,128]{1,0:T(1,128)}', space=vmem, size = 0x9000, scoped, tag = 'internal scratch']
  #allocation2 [shape = 'f32[8,128]{1,0:T(8,128)}', space=vmem, size = 0x1000, scoped, tag = 'scratch operand']
  %s0 = inlined_call_operand.hbm [shape: f32[2,16,128], index: 0, kind: input, shape index: {}]
  %s1 = inlined_call_operand.hbm [shape: f32[16,128], index: 1, kind: input, shape index: {}]
  %s2 = inlined_call_operand.hbm [shape: f32[2,8,128], index: 2, kind: output, shape index: {}]
  %s3 = sld [smem:[#allocation0]]
  $region57: #{tpu_custom_call.1} parent=0
    _
  %s5 = ssub.s32 1, %s3
  %s6 = scalar_select 0, %s5, %s3
  $region1: #{tpu_custom_call.1} parent=0
    #allocation3 [shape = 'u8[16384]{0}', space=vmem, size = 0x4000, scoped, tag = 'input window, operand 0']
    #allocation4 [shape = 's32[2]{0}', space=sflag, size = 0x8, scoped, tag = 'scoped memory for tpu_custom_call.1']
    #allocation5 [shape = 's32[2]{0}', space=sflag, size = 0x8, scoped, tag = 'scoped memory for tpu_custom_call.1']
    #allocation6 [shape = 'u8[8192]{0}', space=vmem, size = 0x2000, scoped, tag = 'input window, operand 1']
    #allocation7 [shape = 's32[2]{0}', space=sflag, size = 0x8, scoped, tag = 'scoped memory for tpu_custom_call.1']
    #allocation8 [shape = 'u8[8192]{0}', space=vmem, size = 0x2000, scoped, tag = 'output window, operand 0']
    %7 = vsyncpa [#allocation4], 0
    %s8 = scalar_lea.sflag [#allocation4], 1
    %9 = vsyncpa %s8, 0
    %10 = vsyncpa [#allocation7], 0
    %s11 = scalar_lea.sflag [#allocation7], 1
    %12 = vsyncpa %s11, 0
    %13 = vsyncpa [#allocation5], 0
    %s14 = scalar_lea.sflag [#allocation5], 1
    %15 = vsyncpa %s14, 0
    loop: start=0, step=1, limit=4
    $region2: #{tpu_custom_call.1} parent=1 // loop_pre_header
      _
    $region3: #{tpu_custom_call.1} parent=1 // loop_header
      %s17 = sphi 0, %s21
      %p18 = scmp.ge.s32.totalorder %s17, 4
      %s24 = sphi 0, %s36
      %s25 = sphi 0, %s32
      %s26 = sphi 0, %s24
      %s27 = sphi 0, %s25
      %s28 = sphi 0, %s26
      %s29 = sphi 0, %s27
      %s41 = sphi 0, %s43
      %s44 = sphi 0, %s41
      %s45 = sphi 0, %s44
      %s61 = sphi 0, %s45
      %s69 = sphi 0, %s71
      %s72 = sphi 0, %s69
      %s73 = sphi 0, %s72
      %s89 = sphi 0, %s73
      %s95 = sphi 0, %s97
      %s98 = sphi 0, %s95
      %s99 = sphi 0, %s98
      %s115 = sphi 0, %s99
    $region4: #{tpu_custom_call.1} parent=1 // loop_header_branch
      %20 = sbr.rel (%p18) target = $region8
    $region5: #{tpu_custom_call.1} parent=1 // loop_body
      %s22 = ssub.s32 %s17, 1
      %s23 = ssub.s32 %s17, 2
      %s30 = sadd.s32 1, %s25
      %p31 = scmp.ge.s32.totalorder %s30, 1
      %s32 = scalar_select %p31, 0, %s30
      %s33 = sadd.s32 1, %s24
      %s34 = scalar_select %p31, %s33, %s24
      %p35 = scmp.ge.s32.totalorder %s34, 2
      %s36 = scalar_select %p35, 0, %s34
      %s37 = sadd.s32 %s24, %s25
      %s38 = sadd.s32 %s36, %s32
      %s39 = ssub.s32 %s37, %s38
      %p40 = scmp.eq.s32.totalorder %s39, 0
      %s42 = sadd.s32 %s41, 1
      %s43 = scalar_select %p40, %s41, %s42
      %p46 = pneg %p40
      %p47 = scmp.eq.s32.totalorder %s17, 1
      %p48 = por %p46, %p47
      %p49 = scmp.ne.s32.totalorder %s41, %s44
      %p50 = scmp.eq.s32.totalorder %s17, 0
      %p51 = por %p49, %p50
      %p52 = scmp.ne.s32.totalorder %s41, %s44
      %p53 = scmp.eq.s32.totalorder %s22, 1
      %p54 = por %p52, %p53
      %p55 = scmp.ne.s32.totalorder %s44, %s45
      %p56 = scmp.eq.s32.totalorder %s22, 0
      %p57 = por %p55, %p56
      %p58 = scmp.ne.s32.totalorder %s44, %s45
      %p59 = scmp.eq.s32.totalorder %s23, 1
      %p60 = por %p58, %p59
      %p62 = scmp.ne.s32.totalorder %s45, %s61
      %p63 = scmp.eq.s32.totalorder %s23, 0
      %p64 = por %p62, %p63
      %s65 = sadd.s32 %s24, %s25
      %s66 = sadd.s32 %s36, %s32
      %s67 = ssub.s32 %s65, %s66
      %p68 = scmp.eq.s32.totalorder %s67, 0
      %s70 = sadd.s32 %s69, 1
      %s71 = scalar_select %p68, %s69, %s70
      %p74 = pneg %p68
      %p75 = scmp.eq.s32.totalorder %s17, 1
      %p76 = por %p74, %p75
      %p77 = scmp.ne.s32.totalorder %s69, %s72
      %p78 = scmp.eq.s32.totalorder %s17, 0
      %p79 = por %p77, %p78
      %p80 = scmp.ne.s32.totalorder %s69, %s72
      %p81 = scmp.eq.s32.totalorder %s22, 1
      %p82 = por %p80, %p81
      %p83 = scmp.ne.s32.totalorder %s72, %s73
      %p84 = scmp.eq.s32.totalorder %s22, 0
      %p85 = por %p83, %p84
      %p86 = scmp.ne.s32.totalorder %s72, %s73
      %p87 = scmp.eq.s32.totalorder %s23, 1
      %p88 = por %p86, %p87
      %p90 = scmp.ne.s32.totalorder %s73, %s89
      %p91 = scmp.eq.s32.totalorder %s23, 0
      %p92 = por %p90, %p91
      %s93 = ssub.s32 %s24, %s36
      %p94 = scmp.eq.s32.totalorder %s93, 0
      %s96 = sadd.s32 %s95, 1
      %s97 = scalar_select %p94, %s95, %s96
      %p100 = pneg %p94
      %p101 = scmp.eq.s32.totalorder %s17, 1
      %p102 = por %p100, %p101
      %p103 = scmp.ne.s32.totalorder %s95, %s98
      %p104 = scmp.eq.s32.totalorder %s17, 0
      %p105 = por %p103, %p104
      %p106 = scmp.ne.s32.totalorder %s95, %s98
      %p107 = scmp.eq.s32.totalorder %s22, 1
      %p108 = por %p106, %p107
      %p109 = scmp.ne.s32.totalorder %s98, %s99
      %p110 = scmp.eq.s32.totalorder %s22, 0
      %p111 = por %p109, %p110
      %p112 = scmp.ne.s32.totalorder %s98, %s99
      %p113 = scmp.eq.s32.totalorder %s23, 1
      %p114 = por %p112, %p113
      %p116 = scmp.ne.s32.totalorder %s99, %s115
      %p117 = scmp.eq.s32.totalorder %s23, 0
      %p118 = por %p116, %p117
      %p119 = scmp.le.s32.totalorder 1, %s17
      %p120 = scmp.lt.s32.totalorder %s17, 3
      %p121 = pnand %p119, %p120
      %p122 = pneg %p121
      // Predicated region
      $region9: #{tpu_custom_call.1} parent=5 // pred_check
        _
      $region10: #{tpu_custom_call.1} parent=5 // pred_check_branch
        %124 = sbr.rel (%p121) target = $region12
      $region11: #{tpu_custom_call.1} parent=5 // pred_region
        %s125 = ssub.s32 %s17, 1
      $region12: #{tpu_custom_call.1} parent=5 // pred_fallthru
        _
      %p126 = scmp.lt.s32.totalorder %s17, 2
      // Predicated region
      $region13: #{tpu_custom_call.1} parent=5 // pred_check
        %p127 = pneg %p126
      $region14: #{tpu_custom_call.1} parent=5 // pred_check_branch
        %129 = sbr.rel (%p127) target = $region16
      $region15: #{tpu_custom_call.1} parent=5 // pred_region
        // Predicated region
        $region17: #{tpu_custom_call.1} parent=15 // pred_check
          %p130 = pneg %p51
        $region18: #{tpu_custom_call.1} parent=15 // pred_check_branch
          %132 = sbr.rel (%p130) target = $region20
        $region19: #{tpu_custom_call.1} parent=15 // pred_region
          %s133 = sand.u32 %s41, 1
          %s134 = scalar_lea.sflag [#allocation4], %s133
          %s135 = sand.u32 %s41, 1
          %s136 = smul.addr %s135, 16
          %s137 = scalar_lea.vmem [#allocation3], %s136
          %s138 = sadd.s32 %s24, %s25
          %140 = vsyncadd %s134, 0
          %s141 = smul.addr %s138, 8
          %s142 = scalar_lea.hbm %s0, %s141
          %s143 = sshll.u32 %s142, 4
          %s144 = int_to_ptr.hbm [resolvable:$true] %s143
          %s145 = sshll.u32 %s137, 4
          %s146 = int_to_ptr.vmem [resolvable:$true] %s145
          %151 = dma.hbm_to_vmem [thread:$0]  %s144, 256, %s146, %s134, 256, 128, 8
        $region20: #{tpu_custom_call.1} parent=15 // pred_fallthru
          _
        // Predicated region
        $region21: #{tpu_custom_call.1} parent=15 // pred_check
          %p152 = pneg %p79
        $region22: #{tpu_custom_call.1} parent=15 // pred_check_branch
          %154 = sbr.rel (%p152) target = $region24
        $region23: #{tpu_custom_call.1} parent=15 // pred_region
          %s155 = sand.u32 %s69, 1
          %s156 = scalar_lea.sflag [#allocation7], %s155
          %s157 = sand.u32 %s69, 1
          %s158 = smul.addr %s157, 8
          %s159 = scalar_lea.vmem [#allocation6], %s158
          %s160 = sadd.s32 %s24, %s25
          %162 = vsyncadd %s156, 0
          %s163 = smul.addr %s160, 8
          %s164 = scalar_lea.hbm %s1, %s163
          %s166 = sshll.u32 %s164, 4
          %s167 = int_to_ptr.hbm [resolvable:$true] %s166
          %s168 = sshll.u32 %s159, 4
          %s169 = int_to_ptr.vmem [resolvable:$true] %s168
          %171 = dma.hbm_to_vmem [thread:$0]  %s167, 128, %s169, %s156
        $region24: #{tpu_custom_call.1} parent=15 // pred_fallthru
          _
      $region16: #{tpu_custom_call.1} parent=5 // pred_fallthru
        _
      %p172 = scmp.le.s32.totalorder 1, %s17
      %p173 = scmp.lt.s32.totalorder %s17, 3
      %p174 = pnand %p172, %p173
      %p175 = pneg %p174
      // Predicated region
      $region25: #{tpu_custom_call.1} parent=5 // pred_check
        _
      $region26: #{tpu_custom_call.1} parent=5 // pred_check_branch
        %177 = sbr.rel (%p174) target = $region28
      $region27: #{tpu_custom_call.1} parent=5 // pred_region
        %s178 = ssub.s32 %s17, 1
        %s179 = sand.u32 %s44, 1
        %s180 = scalar_lea.sflag [#allocation4], %s179
        %s181 = sand.u32 %s44, 1
        %s182 = smul.addr %s181, 16
        %s183 = scalar_lea.vmem [#allocation3], %s182
        // Predicated region
        $region29: #{tpu_custom_call.1} parent=27 // pred_check
          %p184 = pneg %p57
        $region30: #{tpu_custom_call.1} parent=27 // pred_check_branch
          %186 = sbr.rel (%p184) target = $region32
        $region31: #{tpu_custom_call.1} parent=27 // pred_region
          %188 = dma.done %s180, 256
        $region32: #{tpu_custom_call.1} parent=27 // pred_fallthru
          _
        %s189 = sand.u32 %s72, 1
        %s190 = scalar_lea.sflag [#allocation7], %s189
        %s191 = sand.u32 %s72, 1
        %s192 = smul.addr %s191, 8
        %s193 = scalar_lea.vmem [#allocation6], %s192
        // Predicated region
        $region33: #{tpu_custom_call.1} parent=27 // pred_check
          %p194 = pneg %p85
        $region34: #{tpu_custom_call.1} parent=27 // pred_check_branch
          %196 = sbr.rel (%p194) target = $region36
        $region35: #{tpu_custom_call.1} parent=27 // pred_region
          %198 = dma.done %s190, 128
        $region36: #{tpu_custom_call.1} parent=27 // pred_fallthru
          _
        %s199 = sand.u32 %s44, 1
        %s200 = scalar_lea.sflag [#allocation4], %s199
        %s201 = sand.u32 %s44, 1
        %s202 = smul.addr %s201, 16
        %s203 = scalar_lea.vmem [#allocation3], %s202
        %p204 = pneg %p57
        %p205 = pneg %p54
        %s206 = sand.u32 %s72, 1
        %s207 = scalar_lea.sflag [#allocation7], %s206
        %s208 = sand.u32 %s72, 1
        %s209 = smul.addr %s208, 8
        %s210 = scalar_lea.vmem [#allocation6], %s209
        %p211 = pneg %p85
        %p212 = pneg %p82
        %p213 = pneg %p111
        %p214 = pneg %p108
        %s215 = sand.u32 %s98, 1
        %s216 = scalar_lea.sflag [#allocation5], %s215
        %s217 = sand.u32 %s98, 1
        %s218 = smul.addr %s217, 8
        %s219 = scalar_lea.vmem [#allocation8], %s218
        %s220 = sadd.s32 %s26, %s27
        %s221 = sadd.s32 %s26, %s27
        %p222 = scmp.eq.s32.totalorder %s27, 0
        // Predicated region
        $region37: #{tpu_custom_call.1} parent=27 // pred_check
          %p223 = pneg %p222
        $region38: #{tpu_custom_call.1} parent=27 // pred_check_branch
          %225 = sbr.rel (%p223) target = $region40
        $region39: #{tpu_custom_call.1} parent=27 // pred_region
          %226 = vst [vmem:[#allocation2] sm:$0xff] 0.0
        $region40: #{tpu_custom_call.1} parent=27 // pred_fallthru
          _
        %v227 = vld [vmem:[%s183] sm:$0xff]
        %v228 = vld [vmem:[%s183 + $0x8] sm:$0xff]
        %v229 = vmul.f32 %v227, %v227
        %v230 = vmul.f32 %v228, %v228
        %v231 = vadd.f32 %v229, %v230
        %v232 = vrsqrt.pop %v231
        %v233 = vmul.f32 %v232, %v231
        %v234 = vmul.f32 %v233, %v232
        %v235 = vmul.f32 0.5, %v234
        %v236 = vsub.f32 1.5, %v235
        %v237 = vmul.f32 %v232, %v236
        %v238 = vmul.f32 %v231, %v237
        %vm239 = vcmp.eq.f32.partialorder %v231, inf
        %v240 = vsel %vm239, %v231, %v238
        %vm241 = vcmp.eq.f32.partialorder %v231, 0.0
        %v242 = vand.u32 %v231, 2147483648
        %v243 = vsel %vm241, %v242, %v240
        %v244 = vld [vmem:[%s193] sm:$0xff]
        %v245 = vrcp.pop %v244
        %v246 = vmul.f32 %v244, %v245
        %v247 = vsub.f32 1.0, %v246
        %v248 = vmul.f32 %v245, %v247
        %v249 = vadd.f32 %v245, %v248
        %vm250 = vweird.f32 %v244
        %vm251 = vweird.f32 %v245
        %vm252 = vmor %vm250, %vm251
        %v253 = vsel %vm252, %v245, %v249
        %v254 = vand.u32 2147483647, %v244
        %vm255 = vcmp.eq.f32.partialorder %v254, 8.507059e+37
        %v256 = vand.u32 %v244, 2147483648
        %v257 = vor.u32 1.1754944e-38, %v256
        %v258 = vsel %vm255, %v257, %v253
        %v259 = vsub.f32 %v243, %v244
        %v260 = vmul.f32 %v259, %v258
        %v261 = vmul.f32 %v260, %v260
        %s262 = sadd.s32 %s26, %s27
        %s263 = smul.u32 %s262, 1024
        %v264 = vlaneseq
        %v265 = vshrl.u32 %v264, 7
        %v266 = vlaneseq
        %v267 = vand.u32 %v266, 127
        %v268 = vmul.u32 %v265, 128
        %v269 = vstv %s263
        %v270 = vadd.s32 %v269, %v268
        %v271 = vadd.s32 %v270, %v267
        %vm272 = vcmp.lt.s32.totalorder %v271, 36
        %v273 = vld [vmem:[#allocation2] sm:$0xff]
        %v274 = vsel %vm272, %v261, 0.0
        %v275 = vadd.f32 %v273, %v274
        %276 = vst [vmem:[#allocation2] sm:$0xff] %v275
        // Predicated region
        $region41: #{tpu_custom_call.1} parent=27 // pred_check
          %p277 = pneg %p222
        $region42: #{tpu_custom_call.1} parent=27 // pred_check_branch
          %279 = sbr.rel (%p277) target = $region44
        $region43: #{tpu_custom_call.1} parent=27 // pred_region
          %v280 = vld [vmem:[#allocation2] sm:$0xff]
          %281 = vadd.xlane.f32.xlu0 %v280
          %v282 = vpop.xlane.xlu0 %281
          %v283 = vrot.slane %v282, 4
          %v284 = vadd.f32 %v282, %v283
          %v285 = vrot.slane %v284, 2
          %v286 = vadd.f32 %v284, %v285
          %v287 = vrot.slane %v286, 1
          %v288 = vadd.f32 %v286, %v287
          %s289 = vtos %v288
          %v290 = vstv %s289
          %v291 = vadd.f32 %v290, 0.0
          %292 = vst [vmem:[%s219] sm:$0xff] %v291
        $region44: #{tpu_custom_call.1} parent=27 // pred_fallthru
          _
        %s293 = sand.u32 %s98, 1
        %s294 = scalar_lea.sflag [#allocation5], %s293
        %s295 = sand.u32 %s98, 1
        %s296 = smul.addr %s295, 8
        %s297 = scalar_lea.vmem [#allocation8], %s296
        // Predicated region
        $region45: #{tpu_custom_call.1} parent=27 // pred_check
          %p298 = pneg %p108
        $region46: #{tpu_custom_call.1} parent=27 // pred_check_branch
          %300 = sbr.rel (%p298) target = $region48
        $region47: #{tpu_custom_call.1} parent=27 // pred_region
          %302 = vsyncadd %s294, 0
          %s303 = smul.addr %s26, 8
          %s304 = scalar_lea.hbm %s2, %s303
          %s306 = sshll.u32 %s297, 4
          %s307 = int_to_ptr.vmem [resolvable:$true] %s306
          %s308 = sshll.u32 %s304, 4
          %s309 = int_to_ptr.hbm [resolvable:$true] %s308
          %311 = dma.vmem_to_hbm [thread:$0]  %s307, 128, %s309, %s294
        $region48: #{tpu_custom_call.1} parent=27 // pred_fallthru
          _
      $region28: #{tpu_custom_call.1} parent=5 // pred_fallthru
        _
      %p312 = scmp.le.s32.totalorder 2, %s17
      // Predicated region
      $region49: #{tpu_custom_call.1} parent=5 // pred_check
        %p313 = pneg %p312
      $region50: #{tpu_custom_call.1} parent=5 // pred_check_branch
        %315 = sbr.rel (%p313) target = $region52
      $region51: #{tpu_custom_call.1} parent=5 // pred_region
        %s316 = ssub.s32 %s17, 2
        // Predicated region
        $region53: #{tpu_custom_call.1} parent=51 // pred_check
          %p317 = pneg %p114
        $region54: #{tpu_custom_call.1} parent=51 // pred_check_branch
          %319 = sbr.rel (%p317) target = $region56
        $region55: #{tpu_custom_call.1} parent=51 // pred_region
          %s320 = sand.u32 %s99, 1
          %s321 = scalar_lea.sflag [#allocation5], %s320
          %s322 = sand.u32 %s99, 1
          %s323 = smul.addr %s322, 8
          %s324 = scalar_lea.vmem [#allocation8], %s323
          %326 = dma.done %s321, 128
        $region56: #{tpu_custom_call.1} parent=51 // pred_fallthru
          _
      $region52: #{tpu_custom_call.1} parent=5 // pred_fallthru
        _
    $region6: #{tpu_custom_call.1} parent=1 // loop_footer
      %s21 = sadd.s32 1, %s17
    $region7: #{tpu_custom_call.1} parent=1 // loop_footer_branch
      %16 = sbr.rel target = $region3
    $region8: #{tpu_custom_call.1} parent=1 // loop_exit
      _
    %327 = vsyncpa [#allocation4], 1
    %s328 = scalar_lea.sflag [#allocation4], 1
    %329 = vsyncpa %s328, 1
    %330 = vsyncpa [#allocation7], 1
    %s331 = scalar_lea.sflag [#allocation7], 1
    %332 = vsyncpa %s331, 1
    %333 = vsyncpa [#allocation5], 1
    %s334 = scalar_lea.sflag [#allocation5], 1
    %335 = vsyncpa %s334, 1

</llo_original>
